<compile_context>
chip_gen: v6e
topology: v6e:2x2x1
jax: 0.10.0
libtpu: 0.0.40
codegen_flags: <defaults>
</compile_context>

<pallas_src>
import jax
import jax.numpy as jnp
from jax import lax
from jax.experimental import pallas as pl
from jax.experimental.pallas import tpu as pltpu

KERNEL_WIDTHS = (2, 3, 4, 5)
NUM_FILTERS = 16
WORD_DIM = sum(k * NUM_FILTERS for k in KERNEL_WIDTHS)   # 224
OUT_PAD = 256                                            # lane-dense output width
LANE = 128                                               # embedding dim == lane width


def pack_params(params, *, pair_taps=True, dtype=jnp.bfloat16):
    """One-time host-side repack of the PyTorch conv weights.

    Returns (w_all, b_all, plan, k_dim):
      w_all : (k_dim, n_pad) fused weight.  k_dim = 256 when pair_taps (two
              consecutive taps stacked along the contraction axis; best for
              v6e/v7x's 256-deep MXU), else 128 (v5e layout).
      b_all : (1, OUT_PAD) f32 fused bias.
      plan  : static schedule ((k, c_out, ((time_off, col), ...)), ...) driving
              the kernel's shift-add stage (same loop builds weights and plan).
    """
    k_dim = 2 * LANE if pair_taps else LANE
    w_cols, b_cols, plan = [], [], []
    col = 0
    for k in KERNEL_WIDTHS:
        w_pt, b_pt = params[k]                      # (16k, 1, k, E), (16k,)
        c_out = NUM_FILTERS * k
        groups = []
        if pair_taps:
            for p in range(0, k, 2):
                top = jnp.transpose(w_pt[:, 0, p, :])                 # (E, c_out)
                bot = (jnp.transpose(w_pt[:, 0, p + 1, :]) if p + 1 < k
                       else jnp.zeros_like(top))                      # zero-pad odd tap
                w_cols.append(jnp.concatenate([top, bot], axis=0))    # (2E, c_out)
                groups.append((p, col))
                col += c_out
        else:
            for dk in range(k):
                w_cols.append(jnp.transpose(w_pt[:, 0, dk, :]))       # (E, c_out)
                groups.append((dk, col))
                col += c_out
        b_cols.append(b_pt.astype(jnp.float32))
        plan.append((k, c_out, tuple(groups)))
    w_all = jnp.concatenate(w_cols, axis=1)                   # (k_dim, 496 or 864)
    n_cols = w_all.shape[1]
    n_pad = ((n_cols + LANE - 1) // LANE) * LANE              # 512 or 896
    w_all = jnp.pad(w_all, ((0, 0), (0, n_pad - n_cols))).astype(dtype)
    b_all = jnp.pad(jnp.concatenate(b_cols), (0, OUT_PAD - WORD_DIM)).reshape(1, OUT_PAD)
    return w_all, b_all, tuple(plan), k_dim


def _make_kernel(plan, t_real, t_pad, k_dim, pair_taps):
    """Fused conv(all widths/taps) + max-over-time + bias + ReLU for one row tile."""

    def kernel(x_ref, w_ref, b_ref, out_ref):
        x = x_ref[...]                                   # (tb, t_pad, 128)
        tb, _, e = x.shape
        if pair_taps:
            # Next-time-step copy of x for the K=256 contraction.  Rows past the
            # last valid step are zeroed so the zero-padded odd-tap columns never
            # multiply OOB garbage (which could be NaN: NaN*0 = NaN).
            x_next = jnp.concatenate(
                [x[:, 1:t_real, :],
                 jnp.zeros((tb, t_pad - t_real + 1, e), x.dtype)], axis=1)
            lhs = jnp.concatenate([x, x_next], axis=-1)  # (tb, t_pad, 256)
        else:
            lhs = x
        # One big-M 2-D GEMM (M = tb*t_pad); reshapes are layout no-ops since
        # t_pad is a sublane multiple.
        y = jnp.dot(lhs.reshape(tb * t_pad, k_dim), w_ref[...],
                    preferred_element_type=jnp.float32)  # (tb*t_pad, n_pad) f32
        y = y.reshape(tb, t_pad, -1)

        pooled = []
        for k, c_out, groups in plan:
            t_out = t_real - k + 1
            acc = None
            for off, col in groups:                      # shift-add on the narrow output
                sl = y[:, off:off + t_out, col:col + c_out]
                acc = sl if acc is None else acc + sl
            # max over time first; bias+ReLU applied once on the pooled row
            # below (exact: ReLU is monotone and the bias is time-constant).
            pooled.append(jnp.max(acc, axis=1))          # (tb, c_out)
        pooled.append(jnp.zeros((tb, OUT_PAD - WORD_DIM), jnp.float32))
        z = jnp.concatenate(pooled, axis=-1) + b_ref[...]
        out_ref[...] = jnp.maximum(z, 0.0)               # single lane-dense store

    return kernel


def charcnn_forward(x_nchw, packed, *, row_tile=256):
    """x_nchw: (B, 1, T, E=128) -> (B, WORD_DIM, 1) f32 (PyTorch layout).

    row_tile: rows (batch*seq) per grid step.  256 fits every generation's
    VMEM (v7x has 64 MiB per TC); raise to 512-1024 on v5e/v6e (128 MiB) to
    amortize per-step overhead.
    """
    w_all, b_all, plan, k_dim = packed
    B, C, T, E = x_nchw.shape
    assert C == 1
    assert E == LANE, "embedding dim must map exactly onto the 128-lane axis"
    assert T >= max(KERNEL_WIDTHS), "max_len must be >= largest conv width"
    pair_taps = (k_dim == 2 * LANE)
    n_pad = w_all.shape[1]

    # bf16 (or f32) activations; no host-side padding copies: the BlockSpec
    # pads T up to a sublane multiple and pl.cdiv handles the ragged row tail
    # (OOB rows are garbage; their outputs are dropped on the masked store).
    x = x_nchw[:, 0, :, :].astype(w_all.dtype)           # (B, T, E)
    t_pad = ((T + 7) // 8) * 8
    tb = int(min(((row_tile + 7) // 8) * 8, ((B + 7) // 8) * 8))

    # Explicit VMEM budget: the (tb*t_pad, n_pad) f32 intermediate is
    # compiler-managed and invisible to the BlockSpecs.
    isz = jnp.dtype(w_all.dtype).itemsize
    est = (3 * tb * t_pad * LANE * isz                        # x tile (double-buffered)
           + (tb * t_pad * k_dim * isz if pair_taps else 0)   # widened LHS
           + 2 * tb * t_pad * n_pad * 4                       # y intermediate + slices
           + 2 * tb * OUT_PAD * 4                             # output buffers
           + 2 * k_dim * n_pad * isz + 2 * OUT_PAD * 4        # resident weight/bias
           + (8 << 20))                                       # headroom
    vmem_limit = int(min(max(est, 32 << 20), 128 << 20))

    out = pl.pallas_call(
        _make_kernel(plan, T, t_pad, k_dim, pair_taps),
        out_shape=jax.ShapeDtypeStruct((B, OUT_PAD), jnp.float32),
        grid_spec=pltpu.PrefetchScalarGridSpec(
            num_scalar_prefetch=0,
            grid=(pl.cdiv(B, tb),),
            in_specs=[
                pl.BlockSpec((tb, t_pad, LANE), lambda i: (i, 0, 0)),  # x stream
                pl.BlockSpec((k_dim, n_pad), lambda i: (0, 0)),        # fused weight (resident)
                pl.BlockSpec((1, OUT_PAD), lambda i: (0, 0)),          # fused bias (resident)
            ],
            out_specs=pl.BlockSpec((tb, OUT_PAD), lambda i: (i, 0)),
        ),
        compiler_params=pltpu.CompilerParams(
            dimension_semantics=("parallel",),
            vmem_limit_bytes=vmem_limit),
    )(x, w_all, b_all)

    return out[:, :WORD_DIM, None]                        # (B, 224, 1), PyTorch layout


def charcnn_reference(x_nchw, params):
    """Pure-JAX f32 reference mirroring the PyTorch forward (lax.conv in NCHW)."""
    pooled = []
    for k in KERNEL_WIDTHS:
        w_pt, b_pt = params[k]
        y = lax.conv_general_dilated(
            x_nchw.astype(jnp.float32), w_pt.astype(jnp.float32),
            window_strides=(1, 1), padding="VALID",
            dimension_numbers=("NCHW", "OIHW", "NCHW"),
            precision=lax.Precision.HIGHEST,
        )                                              # (B, 16k, T-k+1, 1)
        y = y + b_pt.reshape(1, -1, 1, 1)
        y = jax.nn.relu(y)[:, :, :, 0]                 # squeeze -> (B, 16k, T-k+1)
        pooled.append(jnp.max(y, axis=-1, keepdims=True))   # max_pool1d over full length
    return jnp.concatenate(pooled, axis=1)             # (B, 224, 1)


def init_params(key, emb_dim):
    params = {}
    for k in KERNEL_WIDTHS:
        key, kw, kb = jax.random.split(key, 3)
        c_out = NUM_FILTERS * k
        bound = 1.0 / ((1 * k * emb_dim) ** 0.5)
        w = jax.random.uniform(kw, (c_out, 1, k, emb_dim), jnp.float32, -bound, bound)
        b = jax.random.uniform(kb, (c_out,), jnp.float32, -bound, bound)
        params[k] = (w, b)
    return params


if __name__ == "__main__":
    key = jax.random.PRNGKey(0)
    k_x, k_x2, k_p = jax.random.split(key, 3)

    # Small shapes consistent with the module: (batch*seq)=4, max_len=12, emb_dim=128.
    B, T, E = 4, 12, 128
    x = jax.random.normal(k_x, (B, 1, T, E), jnp.float32)          # NCHW, C=1
    params = init_params(k_p, E)
    ref = jax.block_until_ready(charcnn_reference(x, params))

    # bf16 activations/weights -> compare against the f32 reference at 2e-2.
    TOL = dict(atol=2e-2, rtol=2e-2)

    # K=256 paired-tap layout (preferred on v6e/v7x).
    packed_paired = pack_params(params, pair_taps=True)            # one-time setup
    out = jax.block_until_ready(charcnn_forward(x, packed_paired))
    assert out.shape == (B, WORD_DIM, 1), out.shape
    assert jnp.allclose(out, ref, **TOL), float(jnp.max(jnp.abs(out - ref)))

    # K=128 single-tap layout (preferred on v5e).
    packed_single = pack_params(params, pair_taps=False)
    out_s = jax.block_until_ready(charcnn_forward(x, packed_single))
    assert out_s.shape == (B, WORD_DIM, 1), out_s.shape
    assert jnp.allclose(out_s, ref, **TOL), float(jnp.max(jnp.abs(out_s - ref)))

    # Multiple row tiles + ragged tail (B not a multiple of the tile, no host pad).
    B2 = 20
    x2 = jax.random.normal(k_x2, (B2, 1, T, E), jnp.float32)
    ref2 = jax.block_until_ready(charcnn_reference(x2, params))
    out2 = jax.block_until_ready(charcnn_forward(x2, packed_paired, row_tile=8))
    assert out2.shape == (B2, WORD_DIM, 1), out2.shape
    assert jnp.allclose(out2, ref2, **TOL), float(jnp.max(jnp.abs(out2 - ref2)))

    out3 = jax.block_until_ready(charcnn_forward(x2, packed_single, row_tile=256))
    assert jnp.allclose(out3, ref2, **TOL), float(jnp.max(jnp.abs(out3 - ref2)))

    print("KERNEL_OK")
</pallas_src>

<mosaic_0001>
module attributes {stable_mosaic.version = 11 : i64} {
  func.func @kernel(%arg0: i32, %arg1: memref<8x16x128xbf16, #tpu.memory_space<vmem>>, %arg2: memref<256x512xbf16, #tpu.memory_space<vmem>>, %arg3: memref<1x256xf32, #tpu.memory_space<vmem>>, %arg4: memref<8x256xf32, #tpu.memory_space<vmem>>) attributes {dimension_semantics = [#tpu.dimension_semantics<parallel>], iteration_bounds = array<i64: 1>, scalar_prefetch = 0 : i64, scratch_operands = 0 : i64, tpu.core_type = #tpu.core_type<tc>, window_params = [{transform_indices = @transform_0, window_bounds = array<i64: 8, 16, 128>}, {pipeline_mode = #tpu.pipeline_mode<synchronous>, transform_indices = @transform_1, window_bounds = array<i64: 256, 512>}, {pipeline_mode = #tpu.pipeline_mode<synchronous>, transform_indices = @transform_2, window_bounds = array<i64: 1, 256>}, {transform_indices = @transform_3, window_bounds = array<i64: 8, 256>}]} {
    %c0 = arith.constant 0 : index
    %c0_0 = arith.constant 0 : index
    %c0_1 = arith.constant 0 : index
    %0 = vector.load %arg1[%c0, %c0_0, %c0_1] : memref<8x16x128xbf16, #tpu.memory_space<vmem>>, vector<8x16x128xbf16>
    %1 = vector.extract_strided_slice %0 {offsets = [0, 1, 0], sizes = [8, 11, 128], strides = [1, 1, 1]} : vector<8x16x128xbf16> to vector<8x11x128xbf16>
    %cst = arith.constant 0.000000e+00 : bf16
    %2 = vector.broadcast %cst : bf16 to vector<8x5x128xbf16>
    %3 = tpu.concatenate %1, %2 in 1 : vector<8x11x128xbf16>, vector<8x5x128xbf16> -> vector<8x16x128xbf16>
    %4 = tpu.concatenate %0, %3 in 2 : vector<8x16x128xbf16>, vector<8x16x128xbf16> -> vector<8x16x256xbf16>
    %5 = vector.shape_cast %4 : vector<8x16x256xbf16> to vector<128x256xbf16>
    %c0_2 = arith.constant 0 : index
    %c0_3 = arith.constant 0 : index
    %6 = vector.load %arg2[%c0_2, %c0_3] : memref<256x512xbf16, #tpu.memory_space<vmem>>, vector<256x512xbf16>
    %cst_4 = arith.constant dense<0.000000e+00> : vector<128x512xf32>
    %7 = tpu.matmul %5, %6, %cst_4 {dimension_numbers = #tpu.dot_dimension_numbers<[1], [0], [0], [1], [0, 0, 1, 1], [], []>} : vector<128x256xbf16>, vector<256x512xbf16>, vector<128x512xf32> -> vector<128x512xf32>
    %8 = vector.shape_cast %7 : vector<128x512xf32> to vector<8x16x512xf32>
    %9 = vector.extract_strided_slice %8 {offsets = [0, 0, 0], sizes = [8, 11, 32], strides = [1, 1, 1]} : vector<8x16x512xf32> to vector<8x11x32xf32>
    %cst_5 = arith.constant dense<0xFF800000> : vector<8x32xf32>
    %10 = vector.multi_reduction <maximumf>, %9, %cst_5 [1] : vector<8x11x32xf32> to vector<8x32xf32>
    %11 = vector.extract_strided_slice %8 {offsets = [0, 0, 32], sizes = [8, 10, 48], strides = [1, 1, 1]} : vector<8x16x512xf32> to vector<8x10x48xf32>
    %12 = vector.extract_strided_slice %8 {offsets = [0, 2, 80], sizes = [8, 10, 48], strides = [1, 1, 1]} : vector<8x16x512xf32> to vector<8x10x48xf32>
    %13 = arith.addf %11, %12 : vector<8x10x48xf32>
    %cst_6 = arith.constant dense<0xFF800000> : vector<8x48xf32>
    %14 = vector.multi_reduction <maximumf>, %13, %cst_6 [1] : vector<8x10x48xf32> to vector<8x48xf32>
    %15 = vector.extract_strided_slice %8 {offsets = [0, 0, 128], sizes = [8, 9, 64], strides = [1, 1, 1]} : vector<8x16x512xf32> to vector<8x9x64xf32>
    %16 = vector.extract_strided_slice %8 {offsets = [0, 2, 192], sizes = [8, 9, 64], strides = [1, 1, 1]} : vector<8x16x512xf32> to vector<8x9x64xf32>
    %17 = arith.addf %15, %16 : vector<8x9x64xf32>
    %cst_7 = arith.constant dense<0xFF800000> : vector<8x64xf32>
    %18 = vector.multi_reduction <maximumf>, %17, %cst_7 [1] : vector<8x9x64xf32> to vector<8x64xf32>
    %19 = vector.extract_strided_slice %8 {offsets = [0, 0, 256], sizes = [8, 8, 80], strides = [1, 1, 1]} : vector<8x16x512xf32> to vector<8x8x80xf32>
    %20 = vector.extract_strided_slice %8 {offsets = [0, 2, 336], sizes = [8, 8, 80], strides = [1, 1, 1]} : vector<8x16x512xf32> to vector<8x8x80xf32>
    %21 = arith.addf %19, %20 : vector<8x8x80xf32>
    %22 = vector.extract_strided_slice %8 {offsets = [0, 4, 416], sizes = [8, 8, 80], strides = [1, 1, 1]} : vector<8x16x512xf32> to vector<8x8x80xf32>
    %23 = arith.addf %21, %22 : vector<8x8x80xf32>
    %cst_8 = arith.constant dense<0xFF800000> : vector<8x80xf32>
    %24 = vector.multi_reduction <maximumf>, %23, %cst_8 [1] : vector<8x8x80xf32> to vector<8x80xf32>
    %cst_9 = arith.constant 0.000000e+00 : f32
    %25 = vector.broadcast %cst_9 : f32 to vector<8x32xf32>
    %26 = tpu.concatenate %10, %14, %18, %24, %25 in 1 : vector<8x32xf32>, vector<8x48xf32>, vector<8x64xf32>, vector<8x80xf32>, vector<8x32xf32> -> vector<8x256xf32>
    %c0_10 = arith.constant 0 : index
    %c0_11 = arith.constant 0 : index
    %27 = vector.load %arg3[%c0_10, %c0_11] : memref<1x256xf32, #tpu.memory_space<vmem>>, vector<1x256xf32>
    %28 = vector.broadcast %27 : vector<1x256xf32> to vector<8x256xf32>
    %29 = arith.addf %26, %28 : vector<8x256xf32>
    %cst_12 = arith.constant 0.000000e+00 : f32
    %30 = vector.broadcast %cst_12 : f32 to vector<8x256xf32>
    %31 = arith.maximumf %29, %30 : vector<8x256xf32>
    %c0_13 = arith.constant 0 : index
    %c0_14 = arith.constant 0 : index
    %32 = vector.load %arg4[%c0_13, %c0_14] : memref<8x256xf32, #tpu.memory_space<vmem>>, vector<8x256xf32>
    tpu.vector_store %arg4[%c0_13, %c0_14], %31 {strides = array<i32>} : memref<8x256xf32, #tpu.memory_space<vmem>>, vector<8x256xf32>,
    return
  }
  func.func @transform_0(%arg0: i32) -> (i32, i32, i32) {
    %c0_i32 = arith.constant 0 : i32
    %c0_i32_0 = arith.constant 0 : i32
    %c0_i32_1 = arith.constant 0 : i32
    return %arg0, %c0_i32, %c0_i32_0 : i32, i32, i32
  }
  func.func @transform_1(%arg0: i32) -> (i32, i32) {
    %c0_i32 = arith.constant 0 : i32
    %c0_i32_0 = arith.constant 0 : i32
    %c0_i32_1 = arith.constant 0 : i32
    return %c0_i32, %c0_i32_0 : i32, i32
  }
  func.func @transform_2(%arg0: i32) -> (i32, i32) {
    %c0_i32 = arith.constant 0 : i32
    %c0_i32_0 = arith.constant 0 : i32
    %c0_i32_1 = arith.constant 0 : i32
    return %c0_i32, %c0_i32_0 : i32, i32
  }
  func.func @transform_3(%arg0: i32) -> (i32, i32) {
    %c0_i32 = arith.constant 0 : i32
    %c0_i32_0 = arith.constant 0 : i32
    return %arg0, %c0_i32 : i32, i32
  }
}

</mosaic_0001>

<llo_original>
// kernel: tpu_custom_call.1
$region0: #{tpu_custom_call.1}
  #allocation0 [shape = 'u32[]', space=smem, size = 0x4, offset = 0x4, fixed_abs, tag = 'smem constant byte address 0x4 - core index']
  #allocation1 [shape = 'u32[144,128]{1,0:T(1,128)}', space=vmem, size = 0x12000, scoped, tag = 'internal scratch']
  %s0 = inlined_call_operand.vmem [shape: bf16[4,12,128], index: 0, kind: input, shape index: {}]
  %s1 = inlined_call_operand.hbm [shape: bf16[256,512], index: 1, kind: input, shape index: {}]
  %s2 = inlined_call_operand.vmem [shape: f32[1,256], index: 2, kind: input, shape index: {}]
  %s3 = inlined_call_operand.hbm [shape: f32[4,256], index: 3, kind: output, shape index: {}]
  %s4 = sld [smem:[#allocation0]]
  $region26: #{tpu_custom_call.1} parent=0
    _
  %s6 = ssub.s32 1, %s4
  %s7 = scalar_select 0, %s6, %s4
  $region1: #{tpu_custom_call.1} parent=0
    #allocation2 [shape = 'u8[262144]{0}', space=vmem, size = 0x40000, scoped, tag = 'input window, operand 1, single buffered']
    #allocation3 [shape = 's32[1]{0}', space=sflag, size = 0x4, scoped, tag = 'scoped memory for tpu_custom_call.1']
    #allocation4 [shape = 's32[1]{0}', space=sflag, size = 0x4, scoped, tag = 'scoped memory for tpu_custom_call.1']
    #allocation5 [shape = 'u8[8192]{0}', space=vmem, size = 0x2000, scoped, tag = 'output window, operand 0, single buffered']
    %8 = vsyncpa [#allocation3], 0
    %9 = vsyncpa [#allocation4], 0
    // Predicated region
    $region2: #{tpu_custom_call.1} parent=1 // pred_check
      _
    $region3: #{tpu_custom_call.1} parent=1 // pred_check_branch
      %11 = sbr.rel (0) target = $region5
    $region4: #{tpu_custom_call.1} parent=1 // pred_region
      _
    $region5: #{tpu_custom_call.1} parent=1 // pred_fallthru
      _
    // Predicated region
    $region6: #{tpu_custom_call.1} parent=1 // pred_check
      _
    $region7: #{tpu_custom_call.1} parent=1 // pred_check_branch
      %13 = sbr.rel (0) target = $region9
    $region8: #{tpu_custom_call.1} parent=1 // pred_region
      %s15 = ssub.s32 8192, 8192
      %16 = vsyncadd [#allocation3], %s15
      %s17 = sshll.u32 [#allocation2], 4
      %s18 = int_to_ptr.vmem [resolvable:$true] %s17
      %23 = dma.hbm_to_vmem [thread:$0]  %s1, 8192, %s18, [#allocation3], 256, 256, 16
    $region9: #{tpu_custom_call.1} parent=1 // pred_fallthru
      _
    // Predicated region
    $region10: #{tpu_custom_call.1} parent=1 // pred_check
      _
    $region11: #{tpu_custom_call.1} parent=1 // pred_check_branch
      %25 = sbr.rel (0) target = $region13
    $region12: #{tpu_custom_call.1} parent=1 // pred_region
      _
    $region13: #{tpu_custom_call.1} parent=1 // pred_fallthru
      _
    // Predicated region
    $region14: #{tpu_custom_call.1} parent=1 // pred_check
      _
    $region15: #{tpu_custom_call.1} parent=1 // pred_check_branch
      %27 = sbr.rel (0) target = $region17
    $region16: #{tpu_custom_call.1} parent=1 // pred_region
      %28 = dma.done [#allocation3], 8192
    $region17: #{tpu_custom_call.1} parent=1 // pred_fallthru
      _
    %v30 = vld [vmem:[%s0] sm:$0xf]
    %v31 = vld [vmem:[%s0 + $0x4] sm:$0xf]
    %v32 = vld [vmem:[%s0 + $0x8] sm:$0xf]
    %v33 = vld [vmem:[%s0 + $0xc] sm:$0xf]
    %v34 = vld [vmem:[%s0 + $0x10] sm:$0xf]
    %v35 = vld [vmem:[%s0 + $0x14] sm:$0xf]
    %v36 = vld [vmem:[%s0 + $0x18] sm:$0xf]
    %v37 = vld [vmem:[%s0 + $0x1c] sm:$0xf]
    %v38 = vld [vmem:[%s0 + $0x20] sm:$0xf]
    %v39 = vld [vmem:[%s0 + $0x24] sm:$0xf]
    %v40 = vld [vmem:[%s0 + $0x28] sm:$0xf]
    %v41 = vld [vmem:[%s0 + $0x2c] sm:$0xf]
    %v42 = vld [vmem:[%s0 + $0x30] sm:$0xf]
    %v43 = vld [vmem:[%s0 + $0x34] sm:$0xf]
    %v44 = vld [vmem:[%s0 + $0x38] sm:$0xf]
    %v45 = vld [vmem:[%s0 + $0x3c] sm:$0xf]
    %v62 = vunpack.c.l.b16 %v30
    %v63 = vunpack.c.l.b16 %v31
    %v64 = vunpack.c.l.b16 %v32
    %v65 = vunpack.c.l.b16 %v33
    %v66 = vunpack.c.l.b16 %v34
    %v67 = vunpack.c.l.b16 %v35
    %v68 = vunpack.c.l.b16 %v36
    %v69 = vunpack.c.l.b16 %v37
    %v70 = vunpack.c.l.b16 %v38
    %v71 = vunpack.c.l.b16 %v39
    %v72 = vunpack.c.l.b16 %v40
    %v73 = vunpack.c.l.b16 %v41
    %v74 = vunpack.c.l.b16 %v42
    %v75 = vunpack.c.l.b16 %v43
    %v76 = vunpack.c.l.b16 %v44
    %v77 = vunpack.c.l.b16 %v45
    %v78 = vpack.c.b16 %v63, %v62
    %v79 = vpack.c.b16 %v65, %v64
    %v80 = vpack.c.b16 %v67, %v66
    %v81 = vpack.c.b16 %v69, %v68
    %v82 = vpack.c.b16 %v71, %v70
    %v83 = vpack.c.b16 %v73, %v72
    %v84 = vpack.c.b16 %v75, %v74
    %v85 = vpack.c.b16 %v77, %v76
    %v87 = vshrl.u32 %v78, 16
    %v89 = vshll.u32 %v78, 16
    %v91 = vrot.slane %v89, 1
    %v92 = vor.u32 %v87, %v91
    %v94 = vshrl.u32 %v79, 16
    %v96 = vshll.u32 %v79, 16
    %v98 = vrot.slane %v96, 1
    %v99 = vor.u32 %v94, %v98
    %v101 = vshrl.u32 %v80, 16
    %v103 = vshll.u32 %v80, 16
    %v105 = vrot.slane %v103, 1
    %v106 = vor.u32 %v101, %v105
    %v108 = vshrl.u32 %v81, 16
    %v110 = vshll.u32 %v81, 16
    %v112 = vrot.slane %v110, 1
    %v113 = vor.u32 %v108, %v112
    %v115 = vshrl.u32 %v82, 16
    %v117 = vshll.u32 %v82, 16
    %v119 = vrot.slane %v117, 1
    %v120 = vor.u32 %v115, %v119
    %v122 = vshrl.u32 %v83, 16
    %v124 = vshll.u32 %v83, 16
    %v126 = vrot.slane %v124, 1
    %v127 = vor.u32 %v122, %v126
    %v129 = vshrl.u32 %v84, 16
    %v131 = vshll.u32 %v84, 16
    %v133 = vrot.slane %v131, 1
    %v134 = vor.u32 %v129, %v133
    %v136 = vshrl.u32 %v85, 16
    %v138 = vshll.u32 %v85, 16
    %v140 = vrot.slane %v138, 1
    %v141 = vor.u32 %v136, %v140
    %vm150 = vcmask 1045504
    %vm151 = vsmask.f32 5376
    %vm152 = vmand %vm150, %vm151
    %v153 = vsel %vm152, %v92, 0
    %v154 = vsel %vm152, %v99, 0
    %v155 = vsel %vm152, %v106, 0
    %v156 = vsel %vm152, %v113, 0
    %v157 = vsel %vm152, %v120, 0
    %v158 = vsel %vm152, %v127, 0
    %v159 = vsel %vm152, %v134, 0
    %v160 = vsel %vm152, %v141, 0
    %v169 = vld [vmem:[#allocation2] sm:$0xff]
    %v170 = vld [vmem:[#allocation2 + $0x8] sm:$0xff]
    %v171 = vld [vmem:[#allocation2 + $0x10] sm:$0xff]
    %v172 = vld [vmem:[#allocation2 + $0x18] sm:$0xff]
    %v173 = vld [vmem:[#allocation2 + $0x20] sm:$0xff]
    %v174 = vld [vmem:[#allocation2 + $0x28] sm:$0xff]
    %v175 = vld [vmem:[#allocation2 + $0x30] sm:$0xff]
    %v176 = vld [vmem:[#allocation2 + $0x38] sm:$0xff]
    %v177 = vld [vmem:[#allocation2 + $0x40] sm:$0xff]
    %v178 = vld [vmem:[#allocation2 + $0x48] sm:$0xff]
    %v179 = vld [vmem:[#allocation2 + $0x50] sm:$0xff]
    %v180 = vld [vmem:[#allocation2 + $0x58] sm:$0xff]
    %v181 = vld [vmem:[#allocation2 + $0x60] sm:$0xff]
    %v182 = vld [vmem:[#allocation2 + $0x68] sm:$0xff]
    %v183 = vld [vmem:[#allocation2 + $0x70] sm:$0xff]
    %v184 = vld [vmem:[#allocation2 + $0x78] sm:$0xff]
    %v185 = vld [vmem:[#allocation2 + $0x80] sm:$0xff]
    %v186 = vld [vmem:[#allocation2 + $0x88] sm:$0xff]
    %v187 = vld [vmem:[#allocation2 + $0x90] sm:$0xff]
    %v188 = vld [vmem:[#allocation2 + $0x98] sm:$0xff]
    %v189 = vld [vmem:[#allocation2 + $0xa0] sm:$0xff]
    %v190 = vld [vmem:[#allocation2 + $0xa8] sm:$0xff]
    %v191 = vld [vmem:[#allocation2 + $0xb0] sm:$0xff]
    %v192 = vld [vmem:[#allocation2 + $0xb8] sm:$0xff]
    %v193 = vld [vmem:[#allocation2 + $0xc0] sm:$0xff]
    %v194 = vld [vmem:[#allocation2 + $0xc8] sm:$0xff]
    %v195 = vld [vmem:[#allocation2 + $0xd0] sm:$0xff]
    %v196 = vld [vmem:[#allocation2 + $0xd8] sm:$0xff]
    %v197 = vld [vmem:[#allocation2 + $0xe0] sm:$0xff]
    %v198 = vld [vmem:[#allocation2 + $0xe8] sm:$0xff]
    %v199 = vld [vmem:[#allocation2 + $0xf0] sm:$0xff]
    %v200 = vld [vmem:[#allocation2 + $0xf8] sm:$0xff]
    %v201 = vld [vmem:[#allocation2 + $0x100] sm:$0xff]
    %v202 = vld [vmem:[#allocation2 + $0x108] sm:$0xff]
    %v203 = vld [vmem:[#allocation2 + $0x110] sm:$0xff]
    %v204 = vld [vmem:[#allocation2 + $0x118] sm:$0xff]
    %v205 = vld [vmem:[#allocation2 + $0x120] sm:$0xff]
    %v206 = vld [vmem:[#allocation2 + $0x128] sm:$0xff]
    %v207 = vld [vmem:[#allocation2 + $0x130] sm:$0xff]
    %v208 = vld [vmem:[#allocation2 + $0x138] sm:$0xff]
    %v209 = vld [vmem:[#allocation2 + $0x140] sm:$0xff]
    %v210 = vld [vmem:[#allocation2 + $0x148] sm:$0xff]
    %v211 = vld [vmem:[#allocation2 + $0x150] sm:$0xff]
    %v212 = vld [vmem:[#allocation2 + $0x158] sm:$0xff]
    %v213 = vld [vmem:[#allocation2 + $0x160] sm:$0xff]
    %v214 = vld [vmem:[#allocation2 + $0x168] sm:$0xff]
    %v215 = vld [vmem:[#allocation2 + $0x170] sm:$0xff]
    %v216 = vld [vmem:[#allocation2 + $0x178] sm:$0xff]
    %v217 = vld [vmem:[#allocation2 + $0x180] sm:$0xff]
    %v218 = vld [vmem:[#allocation2 + $0x188] sm:$0xff]
    %v219 = vld [vmem:[#allocation2 + $0x190] sm:$0xff]
    %v220 = vld [vmem:[#allocation2 + $0x198] sm:$0xff]
    %v221 = vld [vmem:[#allocation2 + $0x1a0] sm:$0xff]
    %v222 = vld [vmem:[#allocation2 + $0x1a8] sm:$0xff]
    %v223 = vld [vmem:[#allocation2 + $0x1b0] sm:$0xff]
    %v224 = vld [vmem:[#allocation2 + $0x1b8] sm:$0xff]
    %v225 = vld [vmem:[#allocation2 + $0x1c0] sm:$0xff]
    %v226 = vld [vmem:[#allocation2 + $0x1c8] sm:$0xff]
    %v227 = vld [vmem:[#allocation2 + $0x1d0] sm:$0xff]
    %v228 = vld [vmem:[#allocation2 + $0x1d8] sm:$0xff]
    %v229 = vld [vmem:[#allocation2 + $0x1e0] sm:$0xff]
    %v230 = vld [vmem:[#allocation2 + $0x1e8] sm:$0xff]
    %v231 = vld [vmem:[#allocation2 + $0x1f0] sm:$0xff]
    %v232 = vld [vmem:[#allocation2 + $0x1f8] sm:$0xff]
    %v297 = vunpack.c.l.b16 %v169
    %v298 = vunpack.c.h.b16 %v169
    %v299 = vunpack.c.l.b16 %v170
    %v300 = vunpack.c.h.b16 %v170
    %v301 = vunpack.c.l.b16 %v171
    %v302 = vunpack.c.h.b16 %v171
    %v303 = vunpack.c.l.b16 %v172
    %v304 = vunpack.c.h.b16 %v172
    %v305 = vunpack.c.l.b16 %v173
    %v306 = vunpack.c.h.b16 %v173
    %v307 = vunpack.c.l.b16 %v174
    %v308 = vunpack.c.h.b16 %v174
    %v309 = vunpack.c.l.b16 %v175
    %v310 = vunpack.c.h.b16 %v175
    %v311 = vunpack.c.l.b16 %v176
    %v312 = vunpack.c.h.b16 %v176
    %v313 = vunpack.c.l.b16 %v177
    %v314 = vunpack.c.h.b16 %v177
    %v315 = vunpack.c.l.b16 %v178
    %v316 = vunpack.c.h.b16 %v178
    %v317 = vunpack.c.l.b16 %v179
    %v318 = vunpack.c.h.b16 %v179
    %v319 = vunpack.c.l.b16 %v180
    %v320 = vunpack.c.h.b16 %v180
    %v321 = vunpack.c.l.b16 %v181
    %v322 = vunpack.c.h.b16 %v181
    %v323 = vunpack.c.l.b16 %v182
    %v324 = vunpack.c.h.b16 %v182
    %v325 = vunpack.c.l.b16 %v183
    %v326 = vunpack.c.h.b16 %v183
    %v327 = vunpack.c.l.b16 %v184
    %v328 = vunpack.c.h.b16 %v184
    %v329 = vunpack.c.l.b16 %v185
    %v330 = vunpack.c.h.b16 %v185
    %v331 = vunpack.c.l.b16 %v186
    %v332 = vunpack.c.h.b16 %v186
    %v333 = vunpack.c.l.b16 %v187
    %v334 = vunpack.c.h.b16 %v187
    %v335 = vunpack.c.l.b16 %v188
    %v336 = vunpack.c.h.b16 %v188
    %v337 = vunpack.c.l.b16 %v189
    %v338 = vunpack.c.h.b16 %v189
    %v339 = vunpack.c.l.b16 %v190
    %v340 = vunpack.c.h.b16 %v190
    %v341 = vunpack.c.l.b16 %v191
    %v342 = vunpack.c.h.b16 %v191
    %v343 = vunpack.c.l.b16 %v192
    %v344 = vunpack.c.h.b16 %v192
    %v345 = vunpack.c.l.b16 %v193
    %v346 = vunpack.c.h.b16 %v193
    %v347 = vunpack.c.l.b16 %v194
    %v348 = vunpack.c.h.b16 %v194
    %v349 = vunpack.c.l.b16 %v195
    %v350 = vunpack.c.h.b16 %v195
    %v351 = vunpack.c.l.b16 %v196
    %v352 = vunpack.c.h.b16 %v196
    %v353 = vunpack.c.l.b16 %v197
    %v354 = vunpack.c.h.b16 %v197
    %v355 = vunpack.c.l.b16 %v198
    %v356 = vunpack.c.h.b16 %v198
    %v357 = vunpack.c.l.b16 %v199
    %v358 = vunpack.c.h.b16 %v199
    %v359 = vunpack.c.l.b16 %v200
    %v360 = vunpack.c.h.b16 %v200
    %v361 = vunpack.c.l.b16 %v201
    %v362 = vunpack.c.h.b16 %v201
    %v363 = vunpack.c.l.b16 %v202
    %v364 = vunpack.c.h.b16 %v202
    %v365 = vunpack.c.l.b16 %v203
    %v366 = vunpack.c.h.b16 %v203
    %v367 = vunpack.c.l.b16 %v204
    %v368 = vunpack.c.h.b16 %v204
    %v369 = vunpack.c.l.b16 %v205
    %v370 = vunpack.c.h.b16 %v205
    %v371 = vunpack.c.l.b16 %v206
    %v372 = vunpack.c.h.b16 %v206
    %v373 = vunpack.c.l.b16 %v207
    %v374 = vunpack.c.h.b16 %v207
    %v375 = vunpack.c.l.b16 %v208
    %v376 = vunpack.c.h.b16 %v208
    %v377 = vunpack.c.l.b16 %v209
    %v378 = vunpack.c.h.b16 %v209
    %v379 = vunpack.c.l.b16 %v210
    %v380 = vunpack.c.h.b16 %v210
    %v381 = vunpack.c.l.b16 %v211
    %v382 = vunpack.c.h.b16 %v211
    %v383 = vunpack.c.l.b16 %v212
    %v384 = vunpack.c.h.b16 %v212
    %v385 = vunpack.c.l.b16 %v213
    %v386 = vunpack.c.h.b16 %v213
    %v387 = vunpack.c.l.b16 %v214
    %v388 = vunpack.c.h.b16 %v214
    %v389 = vunpack.c.l.b16 %v215
    %v390 = vunpack.c.h.b16 %v215
    %v391 = vunpack.c.l.b16 %v216
    %v392 = vunpack.c.h.b16 %v216
    %v393 = vunpack.c.l.b16 %v217
    %v394 = vunpack.c.h.b16 %v217
    %v395 = vunpack.c.l.b16 %v218
    %v396 = vunpack.c.h.b16 %v218
    %v397 = vunpack.c.l.b16 %v219
    %v398 = vunpack.c.h.b16 %v219
    %v399 = vunpack.c.l.b16 %v220
    %v400 = vunpack.c.h.b16 %v220
    %v401 = vunpack.c.l.b16 %v221
    %v402 = vunpack.c.h.b16 %v221
    %v403 = vunpack.c.l.b16 %v222
    %v404 = vunpack.c.h.b16 %v222
    %v405 = vunpack.c.l.b16 %v223
    %v406 = vunpack.c.h.b16 %v223
    %v407 = vunpack.c.l.b16 %v224
    %v408 = vunpack.c.h.b16 %v224
    %v409 = vunpack.c.l.b16 %v225
    %v410 = vunpack.c.h.b16 %v225
    %v411 = vunpack.c.l.b16 %v226
    %v412 = vunpack.c.h.b16 %v226
    %v413 = vunpack.c.l.b16 %v227
    %v414 = vunpack.c.h.b16 %v227
    %v415 = vunpack.c.l.b16 %v228
    %v416 = vunpack.c.h.b16 %v228
    %v417 = vunpack.c.l.b16 %v229
    %v418 = vunpack.c.h.b16 %v229
    %v419 = vunpack.c.l.b16 %v230
    %v420 = vunpack.c.h.b16 %v230
    %v421 = vunpack.c.l.b16 %v231
    %v422 = vunpack.c.h.b16 %v231
    %v423 = vunpack.c.l.b16 %v232
    %v424 = vunpack.c.h.b16 %v232
    %v425 = vpack.c.b16 %v301, %v297
    %v426 = vpack.c.b16 %v302, %v298
    %v427 = vpack.c.b16 %v303, %v299
    %v428 = vpack.c.b16 %v304, %v300
    %v429 = vpack.c.b16 %v309, %v305
    %v430 = vpack.c.b16 %v310, %v306
    %v431 = vpack.c.b16 %v311, %v307
    %v432 = vpack.c.b16 %v312, %v308
    %v433 = vpack.c.b16 %v317, %v313
    %v434 = vpack.c.b16 %v318, %v314
    %v435 = vpack.c.b16 %v319, %v315
    %v436 = vpack.c.b16 %v320, %v316
    %v437 = vpack.c.b16 %v325, %v321
    %v438 = vpack.c.b16 %v326, %v322
    %v439 = vpack.c.b16 %v327, %v323
    %v440 = vpack.c.b16 %v328, %v324
    %v441 = vpack.c.b16 %v333, %v329
    %v442 = vpack.c.b16 %v334, %v330
    %v443 = vpack.c.b16 %v335, %v331
    %v444 = vpack.c.b16 %v336, %v332
    %v445 = vpack.c.b16 %v341, %v337
    %v446 = vpack.c.b16 %v342, %v338
    %v447 = vpack.c.b16 %v343, %v339
    %v448 = vpack.c.b16 %v344, %v340
    %v449 = vpack.c.b16 %v349, %v345
    %v450 = vpack.c.b16 %v350, %v346
    %v451 = vpack.c.b16 %v351, %v347
    %v452 = vpack.c.b16 %v352, %v348
    %v453 = vpack.c.b16 %v357, %v353
    %v454 = vpack.c.b16 %v358, %v354
    %v455 = vpack.c.b16 %v359, %v355
    %v456 = vpack.c.b16 %v360, %v356
    %v457 = vpack.c.b16 %v365, %v361
    %v458 = vpack.c.b16 %v366, %v362
    %v459 = vpack.c.b16 %v367, %v363
    %v460 = vpack.c.b16 %v368, %v364
    %v461 = vpack.c.b16 %v373, %v369
    %v462 = vpack.c.b16 %v374, %v370
    %v463 = vpack.c.b16 %v375, %v371
    %v464 = vpack.c.b16 %v376, %v372
    %v465 = vpack.c.b16 %v381, %v377
    %v466 = vpack.c.b16 %v382, %v378
    %v467 = vpack.c.b16 %v383, %v379
    %v468 = vpack.c.b16 %v384, %v380
    %v469 = vpack.c.b16 %v389, %v385
    %v470 = vpack.c.b16 %v390, %v386
    %v471 = vpack.c.b16 %v391, %v387
    %v472 = vpack.c.b16 %v392, %v388
    %v473 = vpack.c.b16 %v397, %v393
    %v474 = vpack.c.b16 %v398, %v394
    %v475 = vpack.c.b16 %v399, %v395
    %v476 = vpack.c.b16 %v400, %v396
    %v477 = vpack.c.b16 %v405, %v401
    %v478 = vpack.c.b16 %v406, %v402
    %v479 = vpack.c.b16 %v407, %v403
    %v480 = vpack.c.b16 %v408, %v404
    %v481 = vpack.c.b16 %v413, %v409
    %v482 = vpack.c.b16 %v414, %v410
    %v483 = vpack.c.b16 %v415, %v411
    %v484 = vpack.c.b16 %v416, %v412
    %v485 = vpack.c.b16 %v421, %v417
    %v486 = vpack.c.b16 %v422, %v418
    %v487 = vpack.c.b16 %v423, %v419
    %v488 = vpack.c.b16 %v424, %v420
    %553 = vmatprep.subr.bf16.mxu0 %v454
    %554 = vmatpush1.bf16.msra.mxu0 %v453
    %555 = vmatprep.subr.bf16.mxu0 %v450
    %556 = vmatpush1.bf16.msra.mxu0 %v449
    %557 = vmatprep.subr.bf16.mxu0 %v446
    %558 = vmatpush1.bf16.msra.mxu0 %v445
    %559 = vmatprep.subr.bf16.mxu0 %v442
    %560 = vmatpush1.bf16.msra.mxu0 %v441
    %561 = vmatprep.subr.bf16.mxu0 %v438
    %562 = vmatpush1.bf16.msra.mxu0 %v437
    %563 = vmatprep.subr.bf16.mxu0 %v434
    %564 = vmatpush1.bf16.msra.mxu0 %v433
    %565 = vmatprep.subr.bf16.mxu0 %v430
    %566 = vmatpush1.bf16.msra.mxu0 %v429
    %567 = vmatprep.subr.bf16.mxu0 %v426
    %568 = vmatpush1.bf16.msra.mxu0 %v425
    %569 = vmatprep.subr.bf16.mxu0 %v486
    %570 = vmatpush2.bf16.msra.mxu0 %v485
    %571 = vmatprep.subr.bf16.mxu0 %v482
    %572 = vmatpush2.bf16.msra.mxu0 %v481
    %573 = vmatprep.subr.bf16.mxu0 %v478
    %574 = vmatpush2.bf16.msra.mxu0 %v477
    %575 = vmatprep.subr.bf16.mxu0 %v474
    %576 = vmatpush2.bf16.msra.mxu0 %v473
    %577 = vmatprep.subr.bf16.mxu0 %v470
    %578 = vmatpush2.bf16.msra.mxu0 %v469
    %579 = vmatprep.subr.bf16.mxu0 %v466
    %580 = vmatpush2.bf16.msra.mxu0 %v465
    %581 = vmatprep.subr.bf16.mxu0 %v462
    %582 = vmatpush2.bf16.msra.mxu0 %v461
    %583 = vmatprep.subr.bf16.mxu0 %v458
    %584 = vmatpush2.bf16.msra.mxu0 %v457
    %585 = vmatprep.mubr.bf16.mxu0 %v153
    %586 = vmatmul.mubr.bf16.gmra.mxu0 %v78
    %v587 = vpop.f32.mrf.mxu0
    %v588 = vadd.f32 0.0, %v587
    %v589 = vpop.f32.mrf.mxu0
    %v590 = vadd.f32 0.0, %v589
    %v591 = vpop.f32.mrf.mxu0
    %v592 = vadd.f32 0.0, %v591
    %v593 = vpop.f32.mrf.mxu0
    %v594 = vadd.f32 0.0, %v593
    %595 = vmatprep.mubr.bf16.mxu0 %v154
    %596 = vmatmul.mubr.bf16.gmra.mxu0 %v79
    %v597 = vpop.f32.mrf.mxu0
    %v598 = vadd.f32 0.0, %v597
    %v599 = vpop.f32.mrf.mxu0
    %v600 = vadd.f32 0.0, %v599
    %v601 = vpop.f32.mrf.mxu0
    %v602 = vadd.f32 0.0, %v601
    %v603 = vpop.f32.mrf.mxu0
    %v604 = vadd.f32 0.0, %v603
    %605 = vmatprep.mubr.bf16.mxu0 %v155
    %606 = vmatmul.mubr.bf16.gmra.mxu0 %v80
    %v607 = vpop.f32.mrf.mxu0
    %v608 = vadd.f32 0.0, %v607
    %v609 = vpop.f32.mrf.mxu0
    %v610 = vadd.f32 0.0, %v609
    %v611 = vpop.f32.mrf.mxu0
    %v612 = vadd.f32 0.0, %v611
    %v613 = vpop.f32.mrf.mxu0
    %v614 = vadd.f32 0.0, %v613
    %615 = vmatprep.mubr.bf16.mxu0 %v156
    %616 = vmatmul.mubr.bf16.gmra.mxu0 %v81
    %v617 = vpop.f32.mrf.mxu0
    %v618 = vadd.f32 0.0, %v617
    %v619 = vpop.f32.mrf.mxu0
    %v620 = vadd.f32 0.0, %v619
    %v621 = vpop.f32.mrf.mxu0
    %v622 = vadd.f32 0.0, %v621
    %v623 = vpop.f32.mrf.mxu0
    %v624 = vadd.f32 0.0, %v623
    %625 = vmatprep.mubr.bf16.mxu0 %v157
    %626 = vmatmul.mubr.bf16.gmra.mxu0 %v82
    %v627 = vpop.f32.mrf.mxu0
    %v628 = vadd.f32 0.0, %v627
    %v629 = vpop.f32.mrf.mxu0
    %v630 = vadd.f32 0.0, %v629
    %v631 = vpop.f32.mrf.mxu0
    %v632 = vadd.f32 0.0, %v631
    %v633 = vpop.f32.mrf.mxu0
    %v634 = vadd.f32 0.0, %v633
    %635 = vmatprep.mubr.bf16.mxu0 %v158
    %636 = vmatmul.mubr.bf16.gmra.mxu0 %v83
    %v637 = vpop.f32.mrf.mxu0
    %v638 = vadd.f32 0.0, %v637
    %v639 = vpop.f32.mrf.mxu0
    %v640 = vadd.f32 0.0, %v639
    %v641 = vpop.f32.mrf.mxu0
    %v642 = vadd.f32 0.0, %v641
    %v643 = vpop.f32.mrf.mxu0
    %v644 = vadd.f32 0.0, %v643
    %645 = vmatprep.mubr.bf16.mxu0 %v159
    %646 = vmatmul.mubr.bf16.gmra.mxu0 %v84
    %v647 = vpop.f32.mrf.mxu0
    %v648 = vadd.f32 0.0, %v647
    %v649 = vpop.f32.mrf.mxu0
    %v650 = vadd.f32 0.0, %v649
    %v651 = vpop.f32.mrf.mxu0
    %v652 = vadd.f32 0.0, %v651
    %v653 = vpop.f32.mrf.mxu0
    %v654 = vadd.f32 0.0, %v653
    %655 = vmatprep.mubr.bf16.mxu0 %v160
    %656 = vmatmul.mubr.bf16.gmra.mxu0 %v85
    %v657 = vpop.f32.mrf.mxu0
    %v658 = vadd.f32 0.0, %v657
    %v659 = vpop.f32.mrf.mxu0
    %v660 = vadd.f32 0.0, %v659
    %v661 = vpop.f32.mrf.mxu0
    %v662 = vadd.f32 0.0, %v661
    %v663 = vpop.f32.mrf.mxu0
    %v664 = vadd.f32 0.0, %v663
    %665 = vdwg.mxu0
    %666 = vmatprep.subr.bf16.mxu0 %v456
    %667 = vmatpush1.bf16.msra.mxu0 %v455
    %668 = vmatprep.subr.bf16.mxu0 %v452
    %669 = vmatpush1.bf16.msra.mxu0 %v451
    %670 = vmatprep.subr.bf16.mxu0 %v448
    %671 = vmatpush1.bf16.msra.mxu0 %v447
    %672 = vmatprep.subr.bf16.mxu0 %v444
    %673 = vmatpush1.bf16.msra.mxu0 %v443
    %674 = vmatprep.subr.bf16.mxu0 %v440
    %675 = vmatpush1.bf16.msra.mxu0 %v439
    %676 = vmatprep.subr.bf16.mxu0 %v436
    %677 = vmatpush1.bf16.msra.mxu0 %v435
    %678 = vmatprep.subr.bf16.mxu0 %v432
    %679 = vmatpush1.bf16.msra.mxu0 %v431
    %680 = vmatprep.subr.bf16.mxu0 %v428
    %681 = vmatpush1.bf16.msra.mxu0 %v427
    %682 = vmatprep.subr.bf16.mxu0 %v488
    %683 = vmatpush2.bf16.msra.mxu0 %v487
    %684 = vmatprep.subr.bf16.mxu0 %v484
    %685 = vmatpush2.bf16.msra.mxu0 %v483
    %686 = vmatprep.subr.bf16.mxu0 %v480
    %687 = vmatpush2.bf16.msra.mxu0 %v479
    %688 = vmatprep.subr.bf16.mxu0 %v476
    %689 = vmatpush2.bf16.msra.mxu0 %v475
    %690 = vmatprep.subr.bf16.mxu0 %v472
    %691 = vmatpush2.bf16.msra.mxu0 %v471
    %692 = vmatprep.subr.bf16.mxu0 %v468
    %693 = vmatpush2.bf16.msra.mxu0 %v467
    %694 = vmatprep.subr.bf16.mxu0 %v464
    %695 = vmatpush2.bf16.msra.mxu0 %v463
    %696 = vmatprep.subr.bf16.mxu0 %v460
    %697 = vmatpush2.bf16.msra.mxu0 %v459
    %698 = vmatprep.mubr.bf16.mxu0 %v153
    %699 = vmatmul.mubr.bf16.gmra.mxu0 %v78
    %v700 = vpop.f32.mrf.mxu0
    %v701 = vadd.f32 0.0, %v700
    %v702 = vpop.f32.mrf.mxu0
    %v703 = vadd.f32 0.0, %v702
    %v704 = vpop.f32.mrf.mxu0
    %v705 = vadd.f32 0.0, %v704
    %v706 = vpop.f32.mrf.mxu0
    %v707 = vadd.f32 0.0, %v706
    %708 = vmatprep.mubr.bf16.mxu0 %v154
    %709 = vmatmul.mubr.bf16.gmra.mxu0 %v79
    %v710 = vpop.f32.mrf.mxu0
    %v711 = vadd.f32 0.0, %v710
    %v712 = vpop.f32.mrf.mxu0
    %v713 = vadd.f32 0.0, %v712
    %v714 = vpop.f32.mrf.mxu0
    %v715 = vadd.f32 0.0, %v714
    %v716 = vpop.f32.mrf.mxu0
    %v717 = vadd.f32 0.0, %v716
    %718 = vmatprep.mubr.bf16.mxu0 %v155
    %719 = vmatmul.mubr.bf16.gmra.mxu0 %v80
    %v720 = vpop.f32.mrf.mxu0
    %v721 = vadd.f32 0.0, %v720
    %v722 = vpop.f32.mrf.mxu0
    %v723 = vadd.f32 0.0, %v722
    %v724 = vpop.f32.mrf.mxu0
    %v725 = vadd.f32 0.0, %v724
    %v726 = vpop.f32.mrf.mxu0
    %v727 = vadd.f32 0.0, %v726
    %728 = vmatprep.mubr.bf16.mxu0 %v156
    %729 = vmatmul.mubr.bf16.gmra.mxu0 %v81
    %v730 = vpop.f32.mrf.mxu0
    %v731 = vadd.f32 0.0, %v730
    %v732 = vpop.f32.mrf.mxu0
    %v733 = vadd.f32 0.0, %v732
    %v734 = vpop.f32.mrf.mxu0
    %v735 = vadd.f32 0.0, %v734
    %v736 = vpop.f32.mrf.mxu0
    %v737 = vadd.f32 0.0, %v736
    %738 = vmatprep.mubr.bf16.mxu0 %v157
    %739 = vmatmul.mubr.bf16.gmra.mxu0 %v82
    %v740 = vpop.f32.mrf.mxu0
    %v741 = vadd.f32 0.0, %v740
    %v742 = vpop.f32.mrf.mxu0
    %v743 = vadd.f32 0.0, %v742
    %v744 = vpop.f32.mrf.mxu0
    %v745 = vadd.f32 0.0, %v744
    %v746 = vpop.f32.mrf.mxu0
    %v747 = vadd.f32 0.0, %v746
    %748 = vmatprep.mubr.bf16.mxu0 %v158
    %749 = vmatmul.mubr.bf16.gmra.mxu0 %v83
    %v750 = vpop.f32.mrf.mxu0
    %v751 = vadd.f32 0.0, %v750
    %v752 = vpop.f32.mrf.mxu0
    %v753 = vadd.f32 0.0, %v752
    %v754 = vpop.f32.mrf.mxu0
    %v755 = vadd.f32 0.0, %v754
    %v756 = vpop.f32.mrf.mxu0
    %v757 = vadd.f32 0.0, %v756
    %758 = vmatprep.mubr.bf16.mxu0 %v159
    %759 = vmatmul.mubr.bf16.gmra.mxu0 %v84
    %v760 = vpop.f32.mrf.mxu0
    %v761 = vadd.f32 0.0, %v760
    %v762 = vpop.f32.mrf.mxu0
    %v763 = vadd.f32 0.0, %v762
    %v764 = vpop.f32.mrf.mxu0
    %v765 = vadd.f32 0.0, %v764
    %v766 = vpop.f32.mrf.mxu0
    %v767 = vadd.f32 0.0, %v766
    %768 = vmatprep.mubr.bf16.mxu0 %v160
    %769 = vmatmul.mubr.bf16.gmra.mxu0 %v85
    %v770 = vpop.f32.mrf.mxu0
    %v771 = vadd.f32 0.0, %v770
    %v772 = vpop.f32.mrf.mxu0
    %v773 = vadd.f32 0.0, %v772
    %v774 = vpop.f32.mrf.mxu0
    %v775 = vadd.f32 0.0, %v774
    %v776 = vpop.f32.mrf.mxu0
    %v777 = vadd.f32 0.0, %v776
    %778 = vdwg.mxu0
    %vm779 = vcmask 261120
    %v780 = vsel %vm779, %v588, -inf
    %vm781 = vcmask 256000
    %v782 = vsel %vm781, %v592, -inf
    %v783 = vmax.f32 %v780, %v782
    %v784 = vrot.slane %v783, 4
    %v785 = vmax.f32 %v783, %v784
    %v786 = vrot.slane %v785, 2
    %v787 = vmax.f32 %v785, %v786
    %v788 = vrot.slane %v787, 1
    %v789 = vmax.f32 %v787, %v788
    %v790 = vsel %vm779, %v598, -inf
    %v791 = vsel %vm781, %v602, -inf
    %v792 = vmax.f32 %v790, %v791
    %v793 = vrot.slane %v792, 4
    %v794 = vmax.f32 %v792, %v793
    %v795 = vrot.slane %v794, 2
    %v796 = vmax.f32 %v794, %v795
    %v797 = vrot.slane %v796, 1
    %v798 = vmax.f32 %v796, %v797
    %v799 = vsel %vm779, %v608, -inf
    %v800 = vsel %vm781, %v612, -inf
    %v801 = vmax.f32 %v799, %v800
    %v802 = vrot.slane %v801, 4
    %v803 = vmax.f32 %v801, %v802
    %v804 = vrot.slane %v803, 2
    %v805 = vmax.f32 %v803, %v804
    %v806 = vrot.slane %v805, 1
    %v807 = vmax.f32 %v805, %v806
    %v808 = vsel %vm779, %v618, -inf
    %v809 = vsel %vm781, %v622, -inf
    %v810 = vmax.f32 %v808, %v809
    %v811 = vrot.slane %v810, 4
    %v812 = vmax.f32 %v810, %v811
    %v813 = vrot.slane %v812, 2
    %v814 = vmax.f32 %v812, %v813
    %v815 = vrot.slane %v814, 1
    %v816 = vmax.f32 %v814, %v815
    %v817 = vsel %vm779, %v628, -inf
    %v818 = vsel %vm781, %v632, -inf
    %v819 = vmax.f32 %v817, %v818
    %v820 = vrot.slane %v819, 4
    %v821 = vmax.f32 %v819, %v820
    %v822 = vrot.slane %v821, 2
    %v823 = vmax.f32 %v821, %v822
    %v824 = vrot.slane %v823, 1
    %v825 = vmax.f32 %v823, %v824
    %v826 = vsel %vm779, %v638, -inf
    %v827 = vsel %vm781, %v642, -inf
    %v828 = vmax.f32 %v826, %v827
    %v829 = vrot.slane %v828, 4
    %v830 = vmax.f32 %v828, %v829
    %v831 = vrot.slane %v830, 2
    %v832 = vmax.f32 %v830, %v831
    %v833 = vrot.slane %v832, 1
    %v834 = vmax.f32 %v832, %v833
    %v835 = vsel %vm779, %v648, -inf
    %v836 = vsel %vm781, %v652, -inf
    %v837 = vmax.f32 %v835, %v836
    %v838 = vrot.slane %v837, 4
    %v839 = vmax.f32 %v837, %v838
    %v840 = vrot.slane %v839, 2
    %v841 = vmax.f32 %v839, %v840
    %v842 = vrot.slane %v841, 1
    %v843 = vmax.f32 %v841, %v842
    %v844 = vsel %vm779, %v658, -inf
    %v845 = vsel %vm781, %v662, -inf
    %v846 = vmax.f32 %v844, %v845
    %v847 = vrot.slane %v846, 4
    %v848 = vmax.f32 %v846, %v847
    %v849 = vrot.slane %v848, 2
    %v850 = vmax.f32 %v848, %v849
    %v851 = vrot.slane %v850, 1
    %v852 = vmax.f32 %v850, %v851
    %vm869 = vcmask 1045504
    %v870 = vrot.slane %v588, 2
    %v871 = vrot.slane %v592, 2
    %v872 = vsel %vm869, %v870, %v871
    %v873 = vrot.slane %v598, 2
    %v874 = vrot.slane %v602, 2
    %v875 = vsel %vm869, %v873, %v874
    %v876 = vrot.slane %v608, 2
    %v877 = vrot.slane %v612, 2
    %v878 = vsel %vm869, %v876, %v877
    %v879 = vrot.slane %v618, 2
    %v880 = vrot.slane %v622, 2
    %v881 = vsel %vm869, %v879, %v880
    %v882 = vrot.slane %v628, 2
    %v883 = vrot.slane %v632, 2
    %v884 = vsel %vm869, %v882, %v883
    %v885 = vrot.slane %v638, 2
    %v886 = vrot.slane %v642, 2
    %v887 = vsel %vm869, %v885, %v886
    %v888 = vrot.slane %v648, 2
    %v889 = vrot.slane %v652, 2
    %v890 = vsel %vm869, %v888, %v889
    %v891 = vrot.slane %v658, 2
    %v892 = vrot.slane %v662, 2
    %v893 = vsel %vm869, %v891, %v892
    %894 = vrot.lane.b32.xlu0 %v872, 80
    %v895 = vpop.permute.xlu0 %894
    %896 = vrot.lane.b32.xlu0 %v871, 80
    %v897 = vpop.permute.xlu0 %896
    %898 = vrot.lane.b32.xlu0 %v875, 80
    %v899 = vpop.permute.xlu0 %898
    %900 = vrot.lane.b32.xlu0 %v874, 80
    %v901 = vpop.permute.xlu0 %900
    %902 = vrot.lane.b32.xlu0 %v878, 80
    %v903 = vpop.permute.xlu0 %902
    %904 = vrot.lane.b32.xlu0 %v877, 80
    %v905 = vpop.permute.xlu0 %904
    %906 = vrot.lane.b32.xlu0 %v881, 80
    %v907 = vpop.permute.xlu0 %906
    %908 = vrot.lane.b32.xlu0 %v880, 80
    %v909 = vpop.permute.xlu0 %908
    %910 = vrot.lane.b32.xlu0 %v884, 80
    %v911 = vpop.permute.xlu0 %910
    %912 = vrot.lane.b32.xlu0 %v883, 80
    %v913 = vpop.permute.xlu0 %912
    %914 = vrot.lane.b32.xlu0 %v887, 80
    %v915 = vpop.permute.xlu0 %914
    %916 = vrot.lane.b32.xlu0 %v886, 80
    %v917 = vpop.permute.xlu0 %916
    %918 = vrot.lane.b32.xlu0 %v890, 80
    %v919 = vpop.permute.xlu0 %918
    %920 = vrot.lane.b32.xlu0 %v889, 80
    %v921 = vpop.permute.xlu0 %920
    %922 = vrot.lane.b32.xlu0 %v893, 80
    %v923 = vpop.permute.xlu0 %922
    %924 = vrot.lane.b32.xlu0 %v892, 80
    %v925 = vpop.permute.xlu0 %924
    %v942 = vadd.f32 %v588, %v895
    %v943 = vadd.f32 %v592, %v897
    %v944 = vadd.f32 %v598, %v899
    %v945 = vadd.f32 %v602, %v901
    %v946 = vadd.f32 %v608, %v903
    %v947 = vadd.f32 %v612, %v905
    %v948 = vadd.f32 %v618, %v907
    %v949 = vadd.f32 %v622, %v909
    %v950 = vadd.f32 %v628, %v911
    %v951 = vadd.f32 %v632, %v913
    %v952 = vadd.f32 %v638, %v915
    %v953 = vadd.f32 %v642, %v917
    %v954 = vadd.f32 %v648, %v919
    %v955 = vadd.f32 %v652, %v921
    %v956 = vadd.f32 %v658, %v923
    %v957 = vadd.f32 %v662, %v925
    %vm958 = vcmask 654592
    %v959 = vsel %vm958, %v942, -inf
    %vm960 = vcmask 648448
    %v961 = vsel %vm960, %v943, -inf
    %v962 = vmax.f32 %v959, %v961
    %v963 = vrot.slane %v962, 4
    %v964 = vmax.f32 %v962, %v963
    %v965 = vrot.slane %v964, 2
    %v966 = vmax.f32 %v964, %v965
    %v967 = vrot.slane %v966, 1
    %v968 = vmax.f32 %v966, %v967
    %v969 = vsel %vm958, %v944, -inf
    %v970 = vsel %vm960, %v945, -inf
    %v971 = vmax.f32 %v969, %v970
    %v972 = vrot.slane %v971, 4
    %v973 = vmax.f32 %v971, %v972
    %v974 = vrot.slane %v973, 2
    %v975 = vmax.f32 %v973, %v974
    %v976 = vrot.slane %v975, 1
    %v977 = vmax.f32 %v975, %v976
    %v978 = vsel %vm958, %v946, -inf
    %v979 = vsel %vm960, %v947, -inf
    %v980 = vmax.f32 %v978, %v979
    %v981 = vrot.slane %v980, 4
    %v982 = vmax.f32 %v980, %v981
    %v983 = vrot.slane %v982, 2
    %v984 = vmax.f32 %v982, %v983
    %v985 = vrot.slane %v984, 1
    %v986 = vmax.f32 %v984, %v985
    %v987 = vsel %vm958, %v948, -inf
    %v988 = vsel %vm960, %v949, -inf
    %v989 = vmax.f32 %v987, %v988
    %v990 = vrot.slane %v989, 4
    %v991 = vmax.f32 %v989, %v990
    %v992 = vrot.slane %v991, 2
    %v993 = vmax.f32 %v991, %v992
    %v994 = vrot.slane %v993, 1
    %v995 = vmax.f32 %v993, %v994
    %v996 = vsel %vm958, %v950, -inf
    %v997 = vsel %vm960, %v951, -inf
    %v998 = vmax.f32 %v996, %v997
    %v999 = vrot.slane %v998, 4
    %v1000 = vmax.f32 %v998, %v999
    %v1001 = vrot.slane %v1000, 2
    %v1002 = vmax.f32 %v1000, %v1001
    %v1003 = vrot.slane %v1002, 1
    %v1004 = vmax.f32 %v1002, %v1003
    %v1005 = vsel %vm958, %v952, -inf
    %v1006 = vsel %vm960, %v953, -inf
    %v1007 = vmax.f32 %v1005, %v1006
    %v1008 = vrot.slane %v1007, 4
    %v1009 = vmax.f32 %v1007, %v1008
    %v1010 = vrot.slane %v1009, 2
    %v1011 = vmax.f32 %v1009, %v1010
    %v1012 = vrot.slane %v1011, 1
    %v1013 = vmax.f32 %v1011, %v1012
    %v1014 = vsel %vm958, %v954, -inf
    %v1015 = vsel %vm960, %v955, -inf
    %v1016 = vmax.f32 %v1014, %v1015
    %v1017 = vrot.slane %v1016, 4
    %v1018 = vmax.f32 %v1016, %v1017
    %v1019 = vrot.slane %v1018, 2
    %v1020 = vmax.f32 %v1018, %v1019
    %v1021 = vrot.slane %v1020, 1
    %v1022 = vmax.f32 %v1020, %v1021
    %v1023 = vsel %vm958, %v956, -inf
    %v1024 = vsel %vm960, %v957, -inf
    %v1025 = vmax.f32 %v1023, %v1024
    %v1026 = vrot.slane %v1025, 4
    %v1027 = vmax.f32 %v1025, %v1026
    %v1028 = vrot.slane %v1027, 2
    %v1029 = vmax.f32 %v1027, %v1028
    %v1030 = vrot.slane %v1029, 1
    %v1031 = vmax.f32 %v1029, %v1030
    %v1048 = vrot.slane %v590, 2
    %v1049 = vrot.slane %v594, 2
    %v1050 = vsel %vm869, %v1048, %v1049
    %v1051 = vrot.slane %v600, 2
    %v1052 = vrot.slane %v604, 2
    %v1053 = vsel %vm869, %v1051, %v1052
    %v1054 = vrot.slane %v610, 2
    %v1055 = vrot.slane %v614, 2
    %v1056 = vsel %vm869, %v1054, %v1055
    %v1057 = vrot.slane %v620, 2
    %v1058 = vrot.slane %v624, 2
    %v1059 = vsel %vm869, %v1057, %v1058
    %v1060 = vrot.slane %v630, 2
    %v1061 = vrot.slane %v634, 2
    %v1062 = vsel %vm869, %v1060, %v1061
    %v1063 = vrot.slane %v640, 2
    %v1064 = vrot.slane %v644, 2
    %v1065 = vsel %vm869, %v1063, %v1064
    %v1066 = vrot.slane %v650, 2
    %v1067 = vrot.slane %v654, 2
    %v1068 = vsel %vm869, %v1066, %v1067
    %v1069 = vrot.slane %v660, 2
    %v1070 = vrot.slane %v664, 2
    %v1071 = vsel %vm869, %v1069, %v1070
    %1072 = vrot.lane.b32.xlu0 %v1050, 64
    %v1073 = vpop.permute.xlu0 %1072
    %1074 = vrot.lane.b32.xlu0 %v1049, 64
    %v1075 = vpop.permute.xlu0 %1074
    %1076 = vrot.lane.b32.xlu0 %v1053, 64
    %v1077 = vpop.permute.xlu0 %1076
    %1078 = vrot.lane.b32.xlu0 %v1052, 64
    %v1079 = vpop.permute.xlu0 %1078
    %1080 = vrot.lane.b32.xlu0 %v1056, 64
    %v1081 = vpop.permute.xlu0 %1080
    %1082 = vrot.lane.b32.xlu0 %v1055, 64
    %v1083 = vpop.permute.xlu0 %1082
    %1084 = vrot.lane.b32.xlu0 %v1059, 64
    %v1085 = vpop.permute.xlu0 %1084
    %1086 = vrot.lane.b32.xlu0 %v1058, 64
    %v1087 = vpop.permute.xlu0 %1086
    %1088 = vrot.lane.b32.xlu0 %v1062, 64
    %v1089 = vpop.permute.xlu0 %1088
    %1090 = vrot.lane.b32.xlu0 %v1061, 64
    %v1091 = vpop.permute.xlu0 %1090
    %1092 = vrot.lane.b32.xlu0 %v1065, 64
    %v1093 = vpop.permute.xlu0 %1092
    %1094 = vrot.lane.b32.xlu0 %v1064, 64
    %v1095 = vpop.permute.xlu0 %1094
    %1096 = vrot.lane.b32.xlu0 %v1068, 64
    %v1097 = vpop.permute.xlu0 %1096
    %1098 = vrot.lane.b32.xlu0 %v1067, 64
    %v1099 = vpop.permute.xlu0 %1098
    %1100 = vrot.lane.b32.xlu0 %v1071, 64
    %v1101 = vpop.permute.xlu0 %1100
    %1102 = vrot.lane.b32.xlu0 %v1070, 64
    %v1103 = vpop.permute.xlu0 %1102
    %v1120 = vadd.f32 %v590, %v1073
    %v1121 = vadd.f32 %v594, %v1075
    %v1122 = vadd.f32 %v600, %v1077
    %v1123 = vadd.f32 %v604, %v1079
    %v1124 = vadd.f32 %v610, %v1081
    %v1125 = vadd.f32 %v614, %v1083
    %v1126 = vadd.f32 %v620, %v1085
    %v1127 = vadd.f32 %v624, %v1087
    %v1128 = vadd.f32 %v630, %v1089
    %v1129 = vadd.f32 %v634, %v1091
    %v1130 = vadd.f32 %v640, %v1093
    %v1131 = vadd.f32 %v644, %v1095
    %v1132 = vadd.f32 %v650, %v1097
    %v1133 = vadd.f32 %v654, %v1099
    %v1134 = vadd.f32 %v660, %v1101
    %v1135 = vadd.f32 %v664, %v1103
    %vm1136 = vcmask 523264
    %v1137 = vsel %vm1136, %v1120, -inf
    %vm1138 = vcmask 516096
    %v1139 = vsel %vm1138, %v1121, -inf
    %v1140 = vmax.f32 %v1137, %v1139
    %v1141 = vrot.slane %v1140, 4
    %v1142 = vmax.f32 %v1140, %v1141
    %v1143 = vrot.slane %v1142, 2
    %v1144 = vmax.f32 %v1142, %v1143
    %v1145 = vrot.slane %v1144, 1
    %v1146 = vmax.f32 %v1144, %v1145
    %v1147 = vsel %vm1136, %v1122, -inf
    %v1148 = vsel %vm1138, %v1123, -inf
    %v1149 = vmax.f32 %v1147, %v1148
    %v1150 = vrot.slane %v1149, 4
    %v1151 = vmax.f32 %v1149, %v1150
    %v1152 = vrot.slane %v1151, 2
    %v1153 = vmax.f32 %v1151, %v1152
    %v1154 = vrot.slane %v1153, 1
    %v1155 = vmax.f32 %v1153, %v1154
    %v1156 = vsel %vm1136, %v1124, -inf
    %v1157 = vsel %vm1138, %v1125, -inf
    %v1158 = vmax.f32 %v1156, %v1157
    %v1159 = vrot.slane %v1158, 4
    %v1160 = vmax.f32 %v1158, %v1159
    %v1161 = vrot.slane %v1160, 2
    %v1162 = vmax.f32 %v1160, %v1161
    %v1163 = vrot.slane %v1162, 1
    %v1164 = vmax.f32 %v1162, %v1163
    %v1165 = vsel %vm1136, %v1126, -inf
    %v1166 = vsel %vm1138, %v1127, -inf
    %v1167 = vmax.f32 %v1165, %v1166
    %v1168 = vrot.slane %v1167, 4
    %v1169 = vmax.f32 %v1167, %v1168
    %v1170 = vrot.slane %v1169, 2
    %v1171 = vmax.f32 %v1169, %v1170
    %v1172 = vrot.slane %v1171, 1
    %v1173 = vmax.f32 %v1171, %v1172
    %v1174 = vsel %vm1136, %v1128, -inf
    %v1175 = vsel %vm1138, %v1129, -inf
    %v1176 = vmax.f32 %v1174, %v1175
    %v1177 = vrot.slane %v1176, 4
    %v1178 = vmax.f32 %v1176, %v1177
    %v1179 = vrot.slane %v1178, 2
    %v1180 = vmax.f32 %v1178, %v1179
    %v1181 = vrot.slane %v1180, 1
    %v1182 = vmax.f32 %v1180, %v1181
    %v1183 = vsel %vm1136, %v1130, -inf
    %v1184 = vsel %vm1138, %v1131, -inf
    %v1185 = vmax.f32 %v1183, %v1184
    %v1186 = vrot.slane %v1185, 4
    %v1187 = vmax.f32 %v1185, %v1186
    %v1188 = vrot.slane %v1187, 2
    %v1189 = vmax.f32 %v1187, %v1188
    %v1190 = vrot.slane %v1189, 1
    %v1191 = vmax.f32 %v1189, %v1190
    %v1192 = vsel %vm1136, %v1132, -inf
    %v1193 = vsel %vm1138, %v1133, -inf
    %v1194 = vmax.f32 %v1192, %v1193
    %v1195 = vrot.slane %v1194, 4
    %v1196 = vmax.f32 %v1194, %v1195
    %v1197 = vrot.slane %v1196, 2
    %v1198 = vmax.f32 %v1196, %v1197
    %v1199 = vrot.slane %v1198, 1
    %v1200 = vmax.f32 %v1198, %v1199
    %v1201 = vsel %vm1136, %v1134, -inf
    %v1202 = vsel %vm1138, %v1135, -inf
    %v1203 = vmax.f32 %v1201, %v1202
    %v1204 = vrot.slane %v1203, 4
    %v1205 = vmax.f32 %v1203, %v1204
    %v1206 = vrot.slane %v1205, 2
    %v1207 = vmax.f32 %v1205, %v1206
    %v1208 = vrot.slane %v1207, 1
    %v1209 = vmax.f32 %v1207, %v1208
    %v1242 = vrot.slane %v701, 2
    %v1243 = vrot.slane %v705, 2
    %v1244 = vsel %vm869, %v1242, %v1243
    %v1245 = vrot.slane %v703, 2
    %v1246 = vrot.slane %v707, 2
    %v1247 = vsel %vm869, %v1245, %v1246
    %v1248 = vrot.slane %v711, 2
    %v1249 = vrot.slane %v715, 2
    %v1250 = vsel %vm869, %v1248, %v1249
    %v1251 = vrot.slane %v713, 2
    %v1252 = vrot.slane %v717, 2
    %v1253 = vsel %vm869, %v1251, %v1252
    %v1254 = vrot.slane %v721, 2
    %v1255 = vrot.slane %v725, 2
    %v1256 = vsel %vm869, %v1254, %v1255
    %v1257 = vrot.slane %v723, 2
    %v1258 = vrot.slane %v727, 2
    %v1259 = vsel %vm869, %v1257, %v1258
    %v1260 = vrot.slane %v731, 2
    %v1261 = vrot.slane %v735, 2
    %v1262 = vsel %vm869, %v1260, %v1261
    %v1263 = vrot.slane %v733, 2
    %v1264 = vrot.slane %v737, 2
    %v1265 = vsel %vm869, %v1263, %v1264
    %v1266 = vrot.slane %v741, 2
    %v1267 = vrot.slane %v745, 2
    %v1268 = vsel %vm869, %v1266, %v1267
    %v1269 = vrot.slane %v743, 2
    %v1270 = vrot.slane %v747, 2
    %v1271 = vsel %vm869, %v1269, %v1270
    %v1272 = vrot.slane %v751, 2
    %v1273 = vrot.slane %v755, 2
    %v1274 = vsel %vm869, %v1272, %v1273
    %v1275 = vrot.slane %v753, 2
    %v1276 = vrot.slane %v757, 2
    %v1277 = vsel %vm869, %v1275, %v1276
    %v1278 = vrot.slane %v761, 2
    %v1279 = vrot.slane %v765, 2
    %v1280 = vsel %vm869, %v1278, %v1279
    %v1281 = vrot.slane %v763, 2
    %v1282 = vrot.slane %v767, 2
    %v1283 = vsel %vm869, %v1281, %v1282
    %v1284 = vrot.slane %v771, 2
    %v1285 = vrot.slane %v775, 2
    %v1286 = vsel %vm869, %v1284, %v1285
    %v1287 = vrot.slane %v773, 2
    %v1288 = vrot.slane %v777, 2
    %v1289 = vsel %vm869, %v1287, %v1288
    %1290 = vrot.lane.b32.xlu0 %v1244, 48
    %v1291 = vpop.permute.xlu0 %1290
    %1292 = vrot.lane.b32.xlu0 %v1247, 48
    %v1293 = vpop.permute.xlu0 %1292
    %1294 = vrot.lane.b32.xlu0 %v1250, 48
    %v1295 = vpop.permute.xlu0 %1294
    %1296 = vrot.lane.b32.xlu0 %v1253, 48
    %v1297 = vpop.permute.xlu0 %1296
    %1298 = vrot.lane.b32.xlu0 %v1256, 48
    %v1299 = vpop.permute.xlu0 %1298
    %1300 = vrot.lane.b32.xlu0 %v1259, 48
    %v1301 = vpop.permute.xlu0 %1300
    %1302 = vrot.lane.b32.xlu0 %v1262, 48
    %v1303 = vpop.permute.xlu0 %1302
    %1304 = vrot.lane.b32.xlu0 %v1265, 48
    %v1305 = vpop.permute.xlu0 %1304
    %1306 = vrot.lane.b32.xlu0 %v1268, 48
    %v1307 = vpop.permute.xlu0 %1306
    %1308 = vrot.lane.b32.xlu0 %v1271, 48
    %v1309 = vpop.permute.xlu0 %1308
    %1310 = vrot.lane.b32.xlu0 %v1274, 48
    %v1311 = vpop.permute.xlu0 %1310
    %1312 = vrot.lane.b32.xlu0 %v1277, 48
    %v1313 = vpop.permute.xlu0 %1312
    %1314 = vrot.lane.b32.xlu0 %v1280, 48
    %v1315 = vpop.permute.xlu0 %1314
    %1316 = vrot.lane.b32.xlu0 %v1283, 48
    %v1317 = vpop.permute.xlu0 %1316
    %1318 = vrot.lane.b32.xlu0 %v1286, 48
    %v1319 = vpop.permute.xlu0 %1318
    %1320 = vrot.lane.b32.xlu0 %v1289, 48
    %v1321 = vpop.permute.xlu0 %1320
    %vm1322 = vcmask 392192
    %v1323 = vsel %vm1322, %v1291, %v1293
    %v1324 = vsel %vm1322, %v1295, %v1297
    %v1325 = vsel %vm1322, %v1299, %v1301
    %v1326 = vsel %vm1322, %v1303, %v1305
    %v1327 = vsel %vm1322, %v1307, %v1309
    %v1328 = vsel %vm1322, %v1311, %v1313
    %v1329 = vsel %vm1322, %v1315, %v1317
    %v1330 = vsel %vm1322, %v1319, %v1321
    %v1339 = vadd.f32 %v701, %v1323
    %v1340 = vadd.f32 %v711, %v1324
    %v1341 = vadd.f32 %v721, %v1325
    %v1342 = vadd.f32 %v731, %v1326
    %v1343 = vadd.f32 %v741, %v1327
    %v1344 = vadd.f32 %v751, %v1328
    %v1345 = vadd.f32 %v761, %v1329
    %v1346 = vadd.f32 %v771, %v1330
    %vm1347 = vcmask 1043456
    %v1348 = vrot.slane %v703, 4
    %v1349 = vrot.slane %v707, 4
    %v1350 = vsel %vm1347, %v1348, %v1349
    %v1351 = vrot.slane %v713, 4
    %v1352 = vrot.slane %v717, 4
    %v1353 = vsel %vm1347, %v1351, %v1352
    %v1354 = vrot.slane %v723, 4
    %v1355 = vrot.slane %v727, 4
    %v1356 = vsel %vm1347, %v1354, %v1355
    %v1357 = vrot.slane %v733, 4
    %v1358 = vrot.slane %v737, 4
    %v1359 = vsel %vm1347, %v1357, %v1358
    %v1360 = vrot.slane %v743, 4
    %v1361 = vrot.slane %v747, 4
    %v1362 = vsel %vm1347, %v1360, %v1361
    %v1363 = vrot.slane %v753, 4
    %v1364 = vrot.slane %v757, 4
    %v1365 = vsel %vm1347, %v1363, %v1364
    %v1366 = vrot.slane %v763, 4
    %v1367 = vrot.slane %v767, 4
    %v1368 = vsel %vm1347, %v1366, %v1367
    %v1369 = vrot.slane %v773, 4
    %v1370 = vrot.slane %v777, 4
    %v1371 = vsel %vm1347, %v1369, %v1370
    %1372 = vrot.lane.b32.xlu0 %v1350, 96
    %v1373 = vpop.permute.xlu0 %1372
    %1374 = vrot.lane.b32.xlu0 %v1353, 96
    %v1375 = vpop.permute.xlu0 %1374
    %1376 = vrot.lane.b32.xlu0 %v1356, 96
    %v1377 = vpop.permute.xlu0 %1376
    %1378 = vrot.lane.b32.xlu0 %v1359, 96
    %v1379 = vpop.permute.xlu0 %1378
    %1380 = vrot.lane.b32.xlu0 %v1362, 96
    %v1381 = vpop.permute.xlu0 %1380
    %1382 = vrot.lane.b32.xlu0 %v1365, 96
    %v1383 = vpop.permute.xlu0 %1382
    %1384 = vrot.lane.b32.xlu0 %v1368, 96
    %v1385 = vpop.permute.xlu0 %1384
    %1386 = vrot.lane.b32.xlu0 %v1371, 96
    %v1387 = vpop.permute.xlu0 %1386
    %v1396 = vadd.f32 %v1339, %v1373
    %v1397 = vadd.f32 %v1340, %v1375
    %v1398 = vadd.f32 %v1341, %v1377
    %v1399 = vadd.f32 %v1342, %v1379
    %v1400 = vadd.f32 %v1343, %v1381
    %v1401 = vadd.f32 %v1344, %v1383
    %v1402 = vadd.f32 %v1345, %v1385
    %v1403 = vadd.f32 %v1346, %v1387
    %vm1404 = vcmask 654336
    %v1405 = vsel %vm1404, %v1396, -inf
    %v1406 = vrot.slane %v1405, 4
    %v1407 = vmax.f32 %v1405, %v1406
    %v1408 = vrot.slane %v1407, 2
    %v1409 = vmax.f32 %v1407, %v1408
    %v1410 = vrot.slane %v1409, 1
    %v1411 = vmax.f32 %v1409, %v1410
    %v1412 = vsel %vm1404, %v1397, -inf
    %v1413 = vrot.slane %v1412, 4
    %v1414 = vmax.f32 %v1412, %v1413
    %v1415 = vrot.slane %v1414, 2
    %v1416 = vmax.f32 %v1414, %v1415
    %v1417 = vrot.slane %v1416, 1
    %v1418 = vmax.f32 %v1416, %v1417
    %v1419 = vsel %vm1404, %v1398, -inf
    %v1420 = vrot.slane %v1419, 4
    %v1421 = vmax.f32 %v1419, %v1420
    %v1422 = vrot.slane %v1421, 2
    %v1423 = vmax.f32 %v1421, %v1422
    %v1424 = vrot.slane %v1423, 1
    %v1425 = vmax.f32 %v1423, %v1424
    %v1426 = vsel %vm1404, %v1399, -inf
    %v1427 = vrot.slane %v1426, 4
    %v1428 = vmax.f32 %v1426, %v1427
    %v1429 = vrot.slane %v1428, 2
    %v1430 = vmax.f32 %v1428, %v1429
    %v1431 = vrot.slane %v1430, 1
    %v1432 = vmax.f32 %v1430, %v1431
    %v1433 = vsel %vm1404, %v1400, -inf
    %v1434 = vrot.slane %v1433, 4
    %v1435 = vmax.f32 %v1433, %v1434
    %v1436 = vrot.slane %v1435, 2
    %v1437 = vmax.f32 %v1435, %v1436
    %v1438 = vrot.slane %v1437, 1
    %v1439 = vmax.f32 %v1437, %v1438
    %v1440 = vsel %vm1404, %v1401, -inf
    %v1441 = vrot.slane %v1440, 4
    %v1442 = vmax.f32 %v1440, %v1441
    %v1443 = vrot.slane %v1442, 2
    %v1444 = vmax.f32 %v1442, %v1443
    %v1445 = vrot.slane %v1444, 1
    %v1446 = vmax.f32 %v1444, %v1445
    %v1447 = vsel %vm1404, %v1402, -inf
    %v1448 = vrot.slane %v1447, 4
    %v1449 = vmax.f32 %v1447, %v1448
    %v1450 = vrot.slane %v1449, 2
    %v1451 = vmax.f32 %v1449, %v1450
    %v1452 = vrot.slane %v1451, 1
    %v1453 = vmax.f32 %v1451, %v1452
    %v1454 = vsel %vm1404, %v1403, -inf
    %v1455 = vrot.slane %v1454, 4
    %v1456 = vmax.f32 %v1454, %v1455
    %v1457 = vrot.slane %v1456, 2
    %v1458 = vmax.f32 %v1456, %v1457
    %v1459 = vrot.slane %v1458, 1
    %v1460 = vmax.f32 %v1458, %v1459
    %vm1469 = vcmask 1041409
    %v1470 = vsel %vm1469, %v798, %v789
    %vm1471 = vcmask 1042434
    %v1472 = vsel %vm1471, %v807, %v1470
    %vm1473 = vcmask 1043459
    %v1474 = vsel %vm1473, %v816, %v1472
    %vm1475 = vcmask 1044484
    %v1476 = vsel %vm1475, %v825, %v1474
    %vm1477 = vcmask 1045509
    %v1478 = vsel %vm1477, %v834, %v1476
    %vm1479 = vcmask 1046534
    %v1480 = vsel %vm1479, %v843, %v1478
    %vm1481 = vcmask 1047559
    %v1482 = vsel %vm1481, %v852, %v1480
    %v1492 = vsel %vm1469, %v977, %v968
    %v1493 = vsel %vm1471, %v986, %v1492
    %v1494 = vsel %vm1473, %v995, %v1493
    %v1495 = vsel %vm1475, %v1004, %v1494
    %v1496 = vsel %vm1477, %v1013, %v1495
    %v1497 = vsel %vm1479, %v1022, %v1496
    %v1498 = vsel %vm1481, %v1031, %v1497
    %v1508 = vsel %vm1469, %v1155, %v1146
    %v1509 = vsel %vm1471, %v1164, %v1508
    %v1510 = vsel %vm1473, %v1173, %v1509
    %v1511 = vsel %vm1475, %v1182, %v1510
    %v1512 = vsel %vm1477, %v1191, %v1511
    %v1513 = vsel %vm1479, %v1200, %v1512
    %v1514 = vsel %vm1481, %v1209, %v1513
    %1515 = vrot.lane.b32.xlu0 %v1514, 80
    %v1516 = vpop.permute.xlu0 %1515
    %v1526 = vsel %vm1469, %v1418, %v1411
    %v1527 = vsel %vm1471, %v1425, %v1526
    %v1528 = vsel %vm1473, %v1432, %v1527
    %v1529 = vsel %vm1475, %v1439, %v1528
    %v1530 = vsel %vm1477, %v1446, %v1529
    %v1531 = vsel %vm1479, %v1453, %v1530
    %v1532 = vsel %vm1481, %v1460, %v1531
    %1533 = vrot.lane.b32.xlu0 %v1532, 16
    %v1534 = vpop.permute.xlu0 %1533
    %v1536 = vsel %vm779, %v1482, %v1498
    %v1537 = vsel %vm1404, %v1536, %v1516
    %vm1538 = vcmask 130048
    %v1539 = vsel %vm1538, %v1516, %v1534
    %vm1540 = vcmask 785408
    %v1541 = vsel %vm1540, %v1539, 0.0
    %v1542 = vld [vmem:[%s2] sm:$0x3]
    %v1544 = vlaneseq
    %v1545 = vshrl.u32 %v1544, 7
    %v1546 = vsub.s32 0, %v1545
    %v1547 = vrot.slane %v1542, %v1546
    %v1548 = vlaneseq
    %v1549 = vshrl.u32 %v1548, 7
    %v1550 = vsub.s32 1, %v1549
    %v1551 = vrot.slane %v1542, %v1550
    %v1554 = vadd.f32 %v1537, %v1547
    %v1555 = vadd.f32 %v1541, %v1551
    %v1556 = vmax.f32 %v1554, 0.0
    %v1557 = vmax.f32 %v1555, 0.0
    %v1560 = vcombine.low %v1556, %v1557
    %v1561 = vcombine.high %v1556, %v1557
    %1564 = vst [vmem:[#allocation5] sm:$0xff] %v1560
    %1565 = vst [vmem:[#allocation5 + $0x8] sm:$0xff] %v1561
    // Predicated region
    $region18: #{tpu_custom_call.1} parent=1 // pred_check
      _
    $region19: #{tpu_custom_call.1} parent=1 // pred_check_branch
      %1567 = sbr.rel (0) target = $region21
    $region20: #{tpu_custom_call.1} parent=1 // pred_region
      %s1569 = ssub.s32 256, 128
      %1570 = vsyncadd [#allocation4], %s1569
      %s1571 = sshll.u32 [#allocation5], 4
      %s1572 = int_to_ptr.vmem [resolvable:$true] %s1571
      %1577 = dma.vmem_to_hbm [thread:$0]  %s1572, 128, %s3, [#allocation4], 128, 128, 8
    $region21: #{tpu_custom_call.1} parent=1 // pred_fallthru
      _
    // Predicated region
    $region22: #{tpu_custom_call.1} parent=1 // pred_check
      _
    $region23: #{tpu_custom_call.1} parent=1 // pred_check_branch
      %1579 = sbr.rel (0) target = $region25
    $region24: #{tpu_custom_call.1} parent=1 // pred_region
      %1580 = dma.done [#allocation4], 256
    $region25: #{tpu_custom_call.1} parent=1 // pred_fallthru
      _
    %1581 = vsyncpa [#allocation3], 1
    %1582 = vsyncpa [#allocation4], 1

</llo_original>
